<compile_context>
chip_gen: v7x
topology: tpu7x:2x2x1
jax: 0.10.0
libtpu: 0.0.40
codegen_flags: <defaults>
</compile_context>

<pallas_src>
import functools

import jax
import jax.numpy as jnp
from jax.experimental import pallas as pl
from jax.experimental.pallas import tpu as pltpu


def _round_up(x: int, m: int) -> int:
    return ((x + m - 1) // m) * m


def _vmem_capacity_bytes() -> int:
    """Physical VMEM per core; fall back to the smallest current part (v7x)."""
    try:
        return int(pltpu.get_tpu_info().vmem_capacity_bytes)
    except Exception:
        return 64 * 1024 * 1024


def _choose_tiles(B, C, itemsize, batch_tile, class_tile, budget):
    """Pick (bt, ct) obeying Mosaic tiling rules and the per-buffer VMEM budget.

    Input block (bt, ct): bt % 8 == 0 or bt == B ; ct % 128 == 0 or ct == C.
    Output block (1, bt): bt % 128 == 0 unless there is a single batch block.
    """
    # --- class tile -----------------------------------------------------
    if class_tile is not None:
        ct = int(class_tile)
        if ct < C:
            ct = max(128, (ct // 128) * 128)          # lane-aligned when splitting C
        ct = min(ct, C)
    else:
        rows_target = min(max(_round_up(B, 8), 8), 256)
        if C * itemsize * rows_target <= budget:
            ct = C                                    # whole row fits comfortably
        else:
            ct = max(128, (budget // (rows_target * itemsize)) // 128 * 128)
            ct = min(ct, C)

    # --- batch tile -----------------------------------------------------
    bt_cap = max(8, (budget // (ct * itemsize)) // 8 * 8)
    if batch_tile is not None:
        bt = int(batch_tile)
        if bt >= B:
            bt = B                                    # single (exact) batch block
        else:
            bt = max(128, (bt // 128) * 128)          # multi-block: lane-dense out
        return bt, ct

    if B < 256 and B <= bt_cap:
        bt = B                                        # one exact block, no OOB rows
    else:
        # >= 2 batch blocks whenever B >= 256 so the "parallel" axis can be
        # sharded across both TensorCores on v7x.
        half = _round_up(pl.cdiv(B, 2), 128)
        bt = max(128, min((bt_cap // 128) * 128, half))
    return bt, ct


def _energy_kernel(logits_ref, out_ref, m_ref, s_ref, *, t, inv_t, ct, valid_c):
    """Streaming (online) t * logsumexp(x / t) over the class axis."""
    k = pl.program_id(1)

    @pl.when(k == 0)
    def _init():
        m_ref[...] = jnp.full_like(m_ref, -jnp.inf)
        s_ref[...] = jnp.zeros_like(s_ref)

    x = logits_ref[...]                                   # (bt, ct), input dtype

    if valid_c is not None:
        # Ragged class tail: lanes beyond the true C hold unspecified data.
        col = k * ct + jax.lax.broadcasted_iota(jnp.int32, x.shape, 1)
        lane_ok = col < valid_c
        x_for_max = jnp.where(lane_ok, x, -jnp.inf)
    else:
        lane_ok = None
        x_for_max = x

    # Running max tracked in *raw logit* units (exact rescale; assumes t > 0).
    tile_max = jnp.max(x_for_max, axis=1, keepdims=True).astype(jnp.float32)
    m_prev = m_ref[...]                                   # (bt, 1) f32
    m_new = jnp.maximum(m_prev, tile_max)

    # Single elementwise pass: exp((x - m_new) / t).  No (bt, ct) temporary is
    # shared across two reduction passes, so nothing tile-sized spills to VMEM.
    e = jnp.exp((x.astype(jnp.float32) - m_new) * inv_t)
    if lane_ok is not None:
        e = jnp.where(lane_ok, e, 0.0)
    s_ref[...] = s_ref[...] * jnp.exp((m_prev - m_new) * inv_t) + jnp.sum(
        e, axis=1, keepdims=True)
    m_ref[...] = m_new

    @pl.when(k == pl.num_programs(1) - 1)
    def _finalize():
        # t * logsumexp(x / t) == m + t * log(sum_j exp((x_j - m) / t))
        res = m_ref[...] + t * jnp.log(s_ref[...])        # (bt, 1)
        # Lane-dense store: per-row results written as a single (1, bt) row.
        out_ref[...] = res.reshape(out_ref.shape).astype(out_ref.dtype)


def energy_ood(logits: jax.Array, temperature: float, *,
               batch_tile: int | None = None,
               class_tile: int | None = None) -> jax.Array:
    """t * logsumexp(logits / t, axis=1).  logits: (B, C) -> (B,) float32."""
    B, C = logits.shape
    t = float(temperature)
    if t <= 0.0:
        raise ValueError("energy_ood kernel assumes temperature > 0")
    inv_t = 1.0 / t
    itemsize = jnp.dtype(logits.dtype).itemsize

    vmem_cap = _vmem_capacity_bytes()
    budget = vmem_cap // 8                  # per pipelined input buffer (x2 live)
    bt, ct = _choose_tiles(B, C, itemsize, batch_tile, class_tile, budget)

    nb = pl.cdiv(B, bt)
    nc = pl.cdiv(C, ct)
    Bp = nb * bt                            # output width; garbage tail sliced off

    kernel = functools.partial(
        _energy_kernel, t=t, inv_t=inv_t, ct=ct,
        valid_c=(C if C % ct != 0 else None))

    cost = pl.CostEstimate(
        flops=3 * B * C,
        transcendentals=B * C,
        bytes_accessed=B * C * itemsize + B * 4,
    )

    out = pl.pallas_call(
        kernel,
        out_shape=jax.ShapeDtypeStruct((1, Bp), jnp.float32),
        grid_spec=pltpu.PrefetchScalarGridSpec(
            num_scalar_prefetch=0,
            grid=(nb, nc),
            in_specs=[pl.BlockSpec((bt, ct), lambda i, k: (i, k))],
            out_specs=pl.BlockSpec((1, bt), lambda i, k: (0, i)),
            scratch_shapes=[
                pltpu.VMEM((bt, 1), jnp.float32),   # running max (raw units)
                pltpu.VMEM((bt, 1), jnp.float32),   # running sum
            ],
        ),
        compiler_params=pltpu.CompilerParams(
            dimension_semantics=("parallel", "arbitrary"),
            vmem_limit_bytes=min(64 * 1024 * 1024, vmem_cap // 2),
        ),
        cost_estimate=cost,
    )(logits)
    return out[0, :B]


if __name__ == "__main__":
    # cfg['temperature'] -- deterministic, in-script "config".
    temperature = 1.5

    # Small (batch, num_classes) consistent with classifier logits.
    B, C = 8, 32
    logits = jax.random.normal(jax.random.PRNGKey(0), (B, C), dtype=jnp.float32)
    out = jax.block_until_ready(energy_ood(logits, temperature))
    ref = temperature * jax.scipy.special.logsumexp(logits / temperature, axis=1)
    assert out.shape == (B,)
    assert jnp.allclose(out, ref, atol=1e-4, rtol=1e-4), (out, ref)

    # Ragged class axis: streamed C tiles with in-kernel tail masking (no pad).
    B2, C2 = 50, 300
    logits2 = jax.random.normal(jax.random.PRNGKey(1), (B2, C2), dtype=jnp.float32)
    out2 = jax.block_until_ready(energy_ood(logits2, temperature, class_tile=128))
    ref2 = temperature * jax.scipy.special.logsumexp(logits2 / temperature, axis=1)
    assert out2.shape == (B2,)
    assert jnp.allclose(out2, ref2, atol=1e-4, rtol=1e-4), (out2, ref2)

    # Ragged batch axis: >= 2 batch blocks (v7x path), partial last block sliced.
    B3, C3 = 300, 40
    logits3 = jax.random.normal(jax.random.PRNGKey(2), (B3, C3), dtype=jnp.float32)
    out3 = jax.block_until_ready(energy_ood(logits3, temperature))
    ref3 = temperature * jax.scipy.special.logsumexp(logits3 / temperature, axis=1)
    assert out3.shape == (B3,)
    assert jnp.allclose(out3, ref3, atol=1e-4, rtol=1e-4), (out3, ref3)

    print("KERNEL_OK")
</pallas_src>

<mosaic_0001>
module attributes {stable_mosaic.version = 11 : i64} {
  func.func @_energy_kernel(%arg0: i32, %arg1: i32, %arg2: memref<8x32xf32, #tpu.memory_space<vmem>>, %arg3: memref<1x8xf32, #tpu.memory_space<vmem>>, %arg4: memref<8x1xf32, #tpu.memory_space<vmem>>, %arg5: memref<8x1xf32, #tpu.memory_space<vmem>>) attributes {dimension_semantics = [#tpu.dimension_semantics<parallel>, #tpu.dimension_semantics<arbitrary>], iteration_bounds = array<i64: 1, 1>, scalar_prefetch = 0 : i64, scratch_operands = 2 : i64, tpu.core_type = #tpu.core_type<tc>, window_params = [{transform_indices = @transform_0, window_bounds = array<i64: 8, 32>}, {transform_indices = @transform_1, window_bounds = array<i64: 1, 8>}]} {
    %c0_i32 = arith.constant 0 : i32
    %0 = arith.cmpi eq, %arg1, %c0_i32 : i32
    %1 = arith.extui %0 : i1 to i32
    %c0_i32_0 = arith.constant 0 : i32
    %2 = arith.cmpi ne, %1, %c0_i32_0 : i32
    scf.if %2 {
      %cst_15 = arith.constant 0xFF800000 : f32
      %27 = vector.broadcast %cst_15 : f32 to vector<8x1xf32>
      %c0_16 = arith.constant 0 : index
      %c0_17 = arith.constant 0 : index
      %28 = vector.load %arg4[%c0_16, %c0_17] : memref<8x1xf32, #tpu.memory_space<vmem>>, vector<8x1xf32>
      tpu.vector_store %arg4[%c0_16, %c0_17], %27 {strides = array<i32>} : memref<8x1xf32, #tpu.memory_space<vmem>>, vector<8x1xf32>,
      %cst_18 = arith.constant 0.000000e+00 : f32
      %29 = vector.broadcast %cst_18 : f32 to vector<8x1xf32>
      %c0_19 = arith.constant 0 : index
      %c0_20 = arith.constant 0 : index
      %30 = vector.load %arg5[%c0_19, %c0_20] : memref<8x1xf32, #tpu.memory_space<vmem>>, vector<8x1xf32>
      tpu.vector_store %arg5[%c0_19, %c0_20], %29 {strides = array<i32>} : memref<8x1xf32, #tpu.memory_space<vmem>>, vector<8x1xf32>,
    } else {
    }
    %c0 = arith.constant 0 : index
    %c0_1 = arith.constant 0 : index
    %3 = vector.load %arg2[%c0, %c0_1] : memref<8x32xf32, #tpu.memory_space<vmem>>, vector<8x32xf32>
    %cst = arith.constant dense<0xFF800000> : vector<8xf32>
    %4 = vector.multi_reduction <maximumf>, %3, %cst [1] : vector<8x32xf32> to vector<8xf32>
    %5 = vector.shape_cast %4 : vector<8xf32> to vector<8x1xf32>
    %c0_2 = arith.constant 0 : index
    %c0_3 = arith.constant 0 : index
    %6 = vector.load %arg4[%c0_2, %c0_3] : memref<8x1xf32, #tpu.memory_space<vmem>>, vector<8x1xf32>
    %7 = arith.maximumf %6, %5 : vector<8x1xf32>
    %8 = vector.broadcast %7 : vector<8x1xf32> to vector<8x32xf32>
    %9 = arith.subf %3, %8 : vector<8x32xf32>
    %cst_4 = arith.constant 0.666666686 : f32
    %10 = vector.broadcast %cst_4 : f32 to vector<8x32xf32>
    %11 = arith.mulf %9, %10 : vector<8x32xf32>
    %12 = math.exp %11 : vector<8x32xf32>
    %c0_5 = arith.constant 0 : index
    %c0_6 = arith.constant 0 : index
    %13 = vector.load %arg5[%c0_5, %c0_6] : memref<8x1xf32, #tpu.memory_space<vmem>>, vector<8x1xf32>
    %14 = arith.subf %6, %7 : vector<8x1xf32>
    %cst_7 = arith.constant 0.666666686 : f32
    %15 = vector.broadcast %cst_7 : f32 to vector<8x1xf32>
    %16 = arith.mulf %14, %15 : vector<8x1xf32>
    %17 = math.exp %16 : vector<8x1xf32>
    %18 = arith.mulf %13, %17 : vector<8x1xf32>
    %cst_8 = arith.constant dense<0.000000e+00> : vector<8xf32>
    %19 = vector.multi_reduction <add>, %12, %cst_8 [1] : vector<8x32xf32> to vector<8xf32>
    %20 = vector.shape_cast %19 : vector<8xf32> to vector<8x1xf32>
    %21 = arith.addf %18, %20 : vector<8x1xf32>
    %c0_9 = arith.constant 0 : index
    %c0_10 = arith.constant 0 : index
    %22 = vector.load %arg5[%c0_9, %c0_10] : memref<8x1xf32, #tpu.memory_space<vmem>>, vector<8x1xf32>
    tpu.vector_store %arg5[%c0_9, %c0_10], %21 {strides = array<i32>} : memref<8x1xf32, #tpu.memory_space<vmem>>, vector<8x1xf32>,
    %c0_11 = arith.constant 0 : index
    %c0_12 = arith.constant 0 : index
    %23 = vector.load %arg4[%c0_11, %c0_12] : memref<8x1xf32, #tpu.memory_space<vmem>>, vector<8x1xf32>
    tpu.vector_store %arg4[%c0_11, %c0_12], %7 {strides = array<i32>} : memref<8x1xf32, #tpu.memory_space<vmem>>, vector<8x1xf32>,
    %c0_i32_13 = arith.constant 0 : i32
    %24 = arith.cmpi eq, %arg1, %c0_i32_13 : i32
    %25 = arith.extui %24 : i1 to i32
    %c0_i32_14 = arith.constant 0 : i32
    %26 = arith.cmpi ne, %25, %c0_i32_14 : i32
    scf.if %26 {
      %c0_15 = arith.constant 0 : index
      %c0_16 = arith.constant 0 : index
      %27 = vector.load %arg4[%c0_15, %c0_16] : memref<8x1xf32, #tpu.memory_space<vmem>>, vector<8x1xf32>
      %c0_17 = arith.constant 0 : index
      %c0_18 = arith.constant 0 : index
      %28 = vector.load %arg5[%c0_17, %c0_18] : memref<8x1xf32, #tpu.memory_space<vmem>>, vector<8x1xf32>
      %29 = math.log %28 : vector<8x1xf32>
      %cst_19 = arith.constant 1.500000e+00 : f32
      %30 = vector.broadcast %cst_19 : f32 to vector<8x1xf32>
      %31 = arith.mulf %30, %29 : vector<8x1xf32>
      %32 = arith.addf %27, %31 : vector<8x1xf32>
      %33 = vector.shape_cast %32 : vector<8x1xf32> to vector<1x8xf32>
      %c0_20 = arith.constant 0 : index
      %c0_21 = arith.constant 0 : index
      %34 = vector.load %arg3[%c0_20, %c0_21] : memref<1x8xf32, #tpu.memory_space<vmem>>, vector<1x8xf32>
      tpu.vector_store %arg3[%c0_20, %c0_21], %33 {strides = array<i32>} : memref<1x8xf32, #tpu.memory_space<vmem>>, vector<1x8xf32>,
    } else {
    }
    return
  }
  func.func @transform_0(%arg0: i32, %arg1: i32) -> (i32, i32) {
    %c0_i32 = arith.constant 0 : i32
    return %arg0, %arg1 : i32, i32
  }
  func.func @transform_1(%arg0: i32, %arg1: i32) -> (i32, i32) {
    %c0_i32 = arith.constant 0 : i32
    %c0_i32_0 = arith.constant 0 : i32
    return %c0_i32, %arg0 : i32, i32
  }
}

</mosaic_0001>

<llo_original>
// kernel: tpu_custom_call.1
$region0: #{tpu_custom_call.1}
  #allocation0 [shape = 'u32[]', space=smem, size = 0x4, offset = 0x4, fixed_abs, tag = 'smem constant byte address 0x4 - core index']
  #allocation1 [shape = 'u32[144,128]{1,0:T(1,128)}', space=vmem, size = 0x12000, scoped, tag = 'internal scratch']
  #allocation2 [shape = 'f32[8,1]{1,0:T(8,128)}', space=vmem, size = 0x1000, scoped, tag = 'scratch operand']
  #allocation3 [shape = 'f32[8,1]{1,0:T(8,128)}', space=vmem, size = 0x1000, scoped, tag = 'scratch operand']
  %s0 = inlined_call_operand.hbm [shape: f32[8,32], index: 0, kind: input, shape index: {}]
  %s1 = inlined_call_operand.hbm [shape: f32[1,8], index: 1, kind: output, shape index: {}]
  %s2 = sld [smem:[#allocation0]]
  $region26: #{tpu_custom_call.1} parent=0
    _
  %s4 = ssub.s32 1, %s2
  %s5 = scalar_select 0, %s4, %s2
  $region1: #{tpu_custom_call.1} parent=0
    #allocation4 [shape = 'u8[4096]{0}', space=vmem, size = 0x1000, scoped, tag = 'input window, operand 0, single buffered']
    #allocation5 [shape = 's32[1]{0}', space=sflag, size = 0x4, scoped, tag = 'scoped memory for tpu_custom_call.1']
    #allocation6 [shape = 's32[1]{0}', space=sflag, size = 0x4, scoped, tag = 'scoped memory for tpu_custom_call.1']
    #allocation7 [shape = 'u8[512]{0}', space=vmem, size = 0x400, scoped, tag = 'output window, operand 0, single buffered']
    %6 = vsyncpa [#allocation5], 0
    %7 = vsyncpa [#allocation6], 0
    // Predicated region
    $region2: #{tpu_custom_call.1} parent=1 // pred_check
      _
    $region3: #{tpu_custom_call.1} parent=1 // pred_check_branch
      %9 = sbr.rel (0) target = $region5
    $region4: #{tpu_custom_call.1} parent=1 // pred_region
      %s11 = ssub.s32 128, 128
      %12 = vsyncadd [#allocation5], %s11
      %s14 = sshll.u32 [#allocation4], 4
      %s15 = int_to_ptr.vmem [resolvable:$true] %s14
      %17 = dma.hbm_to_vmem [thread:$0]  %s0, 128, %s15, [#allocation5]
    $region5: #{tpu_custom_call.1} parent=1 // pred_fallthru
      _
    // Predicated region
    $region6: #{tpu_custom_call.1} parent=1 // pred_check
      _
    $region7: #{tpu_custom_call.1} parent=1 // pred_check_branch
      %19 = sbr.rel (0) target = $region9
    $region8: #{tpu_custom_call.1} parent=1 // pred_region
      %20 = dma.done [#allocation5], 128
    $region9: #{tpu_custom_call.1} parent=1 // pred_fallthru
      _
    %p21 = scmp.eq.s32.totalorder 0, 0
    // Predicated region
    $region10: #{tpu_custom_call.1} parent=1 // pred_check
      %p22 = pneg %p21
    $region11: #{tpu_custom_call.1} parent=1 // pred_check_branch
      %24 = sbr.rel (%p22) target = $region13
    $region12: #{tpu_custom_call.1} parent=1 // pred_region
      %vm25 = vcmask 7168
      %26 = vst.msk [vmem:[#allocation2] sm:$0xff] %vm25, -inf
      %27 = vst.msk [vmem:[#allocation3] sm:$0xff] %vm25, 0.0
    $region13: #{tpu_custom_call.1} parent=1 // pred_fallthru
      _
    %v28 = vld [vmem:[#allocation4] sm:$0xff]
    %vm29 = vcmask 261120
    %v30 = vsel %vm29, %v28, -inf
    %31 = vmax.xlane.f32.xlu0 %v30
    %v32 = vpop.xlane.xlu0 %31
    %v33 = vld [vmem:[#allocation2] sm:$0xff]
    %v34 = vmax.f32 %v33, %v32
    %36 = vset.pattern.permute.xlu0 0
    %37 = vperm.xlu0 %36, %v34
    %v38 = vpop.permute.xlu0 %37
    %v40 = vsub.f32 %v28, %v38
    %v41 = vmul.f32 %v40, 0.6666667
    %v42 = vmul.f32 %v41, 1.442695
    %v43 = vpow.pop %v42
    %v44 = vld [vmem:[#allocation3] sm:$0xff]
    %v45 = vsub.f32 %v33, %v34
    %v46 = vmul.f32 %v45, 0.6666667
    %v47 = vmul.f32 %v46, 1.442695
    %v48 = vpow.pop %v47
    %v49 = vmul.f32 %v44, %v48
    %v50 = vsel %vm29, %v43, 0.0
    %51 = vadd.xlane.f32.xlu0 %v50
    %v52 = vpop.xlane.xlu0 %51
    %v53 = vadd.f32 %v49, %v52
    %vm54 = vcmask 7168
    %55 = vst.msk [vmem:[#allocation3] sm:$0xff] %vm54, %v53
    %56 = vst.msk [vmem:[#allocation2] sm:$0xff] %vm54, %v34
    // Predicated region
    $region14: #{tpu_custom_call.1} parent=1 // pred_check
      %p57 = pneg %p21
    $region15: #{tpu_custom_call.1} parent=1 // pred_check_branch
      %59 = sbr.rel (%p57) target = $region17
    $region16: #{tpu_custom_call.1} parent=1 // pred_region
      %v60 = vld [vmem:[#allocation2] sm:$0xff]
      %v61 = vld [vmem:[#allocation3] sm:$0xff]
      %v62 = vlog2.pop %v61
      %v63 = vmul.f32 %v62, 0.6931472
      %v64 = vmul.f32 %v63, 1.5
      %v65 = vadd.f32 %v60, %v64
      %67 = vset.pattern.permute.xlu0 0
      %68 = vperm.xlu0 %67, %v65
      %v69 = vpop.permute.xlu0 %68
      %v70 = vlaneseq
      %v71 = vand.u32 %v70, 127
      %v72 = vlaneseq
      %v73 = vshrl.u32 %v72, 7
      %v74 = vsub.s32 %v71, %v73
      %v75 = vrot.slane %v69, %v74
      %vm77 = vcmask 57344
      %78 = vst.msk [vmem:[#allocation7] sm:$0x1] %vm77, %v75
    $region17: #{tpu_custom_call.1} parent=1 // pred_fallthru
      _
    // Predicated region
    $region18: #{tpu_custom_call.1} parent=1 // pred_check
      _
    $region19: #{tpu_custom_call.1} parent=1 // pred_check_branch
      %80 = sbr.rel (0) target = $region21
    $region20: #{tpu_custom_call.1} parent=1 // pred_region
      %s82 = ssub.s32 16, 16
      %83 = vsyncadd [#allocation6], %s82
      %s85 = sshll.u32 [#allocation7], 4
      %s86 = int_to_ptr.vmem [resolvable:$true] %s85
      %88 = dma.vmem_to_hbm [thread:$0]  %s86, 16, %s1, [#allocation6]
    $region21: #{tpu_custom_call.1} parent=1 // pred_fallthru
      _
    // Predicated region
    $region22: #{tpu_custom_call.1} parent=1 // pred_check
      _
    $region23: #{tpu_custom_call.1} parent=1 // pred_check_branch
      %90 = sbr.rel (0) target = $region25
    $region24: #{tpu_custom_call.1} parent=1 // pred_region
      %91 = dma.done [#allocation6], 16
    $region25: #{tpu_custom_call.1} parent=1 // pred_fallthru
      _
    %92 = vsyncpa [#allocation5], 1
    %93 = vsyncpa [#allocation6], 1

</llo_original>
